<compile_context>
chip_gen: v5e
topology: v5e:2x2
jax: 0.10.0
libtpu: 0.0.40
codegen_flags: <defaults>
</compile_context>

<pallas_src>
import functools

import jax
import jax.numpy as jnp
from jax.experimental import pallas as pl
from jax.experimental.pallas import tpu as pltpu

LANE = 128      # lane width: hidden feature dims are padded to multiples of this
SUBLANE = 8     # sublane group: batch tiles are multiples of this


def _round_up(x, m):
    return (x + m - 1) // m * m


def _cdiv(a, b):
    return -(-a // b)


def agent_net_kernel(obs_ref,
                     w1_ref, b1_ref,
                     w2_ref, b2_ref,
                     w3_ref, b3_ref,
                     w4_ref, b4_ref,
                     w5_ref, b5_ref,
                     out_ref):
    """One batch tile: 5 MXU matmuls (bf16 operands, f32 accumulate) + ReLU chain."""

    def layer(x_bf16, w_ref, b_ref, relu=True):
        acc = jnp.dot(x_bf16, w_ref[...],
                      preferred_element_type=jnp.float32) + b_ref[...]
        if relu:
            acc = jnp.maximum(acc, 0.0)                        # f32 VPU math (v5e-safe)
        return acc

    x = obs_ref[...]                                           # bf16 [tile_b, input_dim]
    h = layer(x, w1_ref, b1_ref)                               # relu(fc1)   -> [tile_b, HPAD]
    h = layer(h.astype(jnp.bfloat16), w2_ref, b2_ref)          # relu(fc2)   (dropout = identity)
    h = layer(h.astype(jnp.bfloat16), w3_ref, b3_ref)          # relu(fc3)   (dropout = identity)
    h = layer(h.astype(jnp.bfloat16), w4_ref, b4_ref)          # relu(fc4)   -> [tile_b, H2PAD]
    q = layer(h.astype(jnp.bfloat16), w5_ref, b5_ref, relu=False)   # fc5   -> [tile_b, n_actions]
    out_ref[...] = q.astype(out_ref.dtype)                     # narrow store (batch pad rows only)


def prepare_params(params):
    """One-time: pad hidden dims to lane-aligned slabs + cast weights to bf16.

    Padding is exact: padded hidden columns are relu(0*x + 0) = 0 and hit zero
    weight rows downstream; input / n_actions dims are left unpadded."""
    (w1, b1), (w2, b2), (w3, b3), (w4, b4), (w5, b5) = params
    input_dim, hidden = w1.shape
    h2 = w4.shape[1]
    n_actions = w5.shape[1]
    hpad = _round_up(hidden, LANE)
    h2pad = _round_up(h2, LANE)

    def pad2(a, rows, cols, dtype):
        r, c = a.shape
        return jnp.pad(a, ((0, rows - r), (0, cols - c))).astype(dtype)

    w1p = pad2(w1, input_dim, hpad, jnp.bfloat16)
    w2p = pad2(w2, hpad, hpad, jnp.bfloat16)
    w3p = pad2(w3, hpad, hpad, jnp.bfloat16)
    w4p = pad2(w4, hpad, h2pad, jnp.bfloat16)
    w5p = pad2(w5, h2pad, n_actions, jnp.bfloat16)
    b1p = pad2(b1.reshape(1, -1), 1, hpad, jnp.float32)
    b2p = pad2(b2.reshape(1, -1), 1, hpad, jnp.float32)
    b3p = pad2(b3.reshape(1, -1), 1, hpad, jnp.float32)
    b4p = pad2(b4.reshape(1, -1), 1, h2pad, jnp.float32)
    b5p = pad2(b5.reshape(1, -1), 1, n_actions, jnp.float32)
    return (w1p, b1p, w2p, b2p, w3p, b3p, w4p, b4p, w5p, b5p)


@functools.partial(jax.jit, static_argnames=("tile_b",))
def agent_net_forward(obs, prepared, *, tile_b=2048):
    """Batch-tiled forward. `prepared` = prepare_params(params), computed once."""
    w1p, b1p, w2p, b2p, w3p, b3p, w4p, b4p, w5p, b5p = prepared
    B, input_dim = obs.shape
    n_actions = w5p.shape[1]
    hpad = w1p.shape[1]
    h2pad = w4p.shape[1]

    # --- adaptive batch tiling: pad at most one sublane group; for large B ensure
    # --- >= 2 grid steps so the "parallel" axis can shard across v7x's two TCs.
    tile_b = _round_up(max(tile_b, SUBLANE), SUBLANE)
    b_su = _round_up(max(B, SUBLANE), SUBLANE)
    min_steps = 2 if b_su >= 2048 else 1
    n_steps = max(min_steps, _cdiv(b_su, tile_b))
    tile = min(tile_b, _round_up(_cdiv(b_su, n_steps), SUBLANE))
    B_pad = tile * n_steps

    obs_p = jnp.pad(obs, ((0, B_pad - B), (0, 0))).astype(jnp.bfloat16)

    resident = lambda arr: pl.BlockSpec(arr.shape, lambda i: (0, 0))

    flops = 2 * B_pad * (input_dim * hpad + 2 * hpad * hpad
                         + hpad * h2pad + h2pad * n_actions)
    bytes_accessed = (obs_p.size * 2 + B_pad * n_actions * 4
                      + sum(w.size * 2 for w in (w1p, w2p, w3p, w4p, w5p))
                      + sum(b.size * 4 for b in (b1p, b2p, b3p, b4p, b5p)))

    q_pad = pl.pallas_call(
        agent_net_kernel,
        out_shape=jax.ShapeDtypeStruct((B_pad, n_actions), jnp.float32),
        grid=(n_steps,),
        in_specs=[pl.BlockSpec((tile, input_dim), lambda i: (i, 0)),   # narrow obs tile
                  resident(w1p), resident(b1p),
                  resident(w2p), resident(b2p),
                  resident(w3p), resident(b3p),
                  resident(w4p), resident(b4p),
                  resident(w5p), resident(b5p)],
        out_specs=pl.BlockSpec((tile, n_actions), lambda i: (i, 0)),   # narrow output tile
        compiler_params=pltpu.CompilerParams(
            dimension_semantics=("parallel",),            # dual-TC sharding on v7x
            vmem_limit_bytes=32 * 1024 * 1024),           # ample; not the constraint
        cost_estimate=pl.CostEstimate(
            flops=flops, transcendentals=0, bytes_accessed=bytes_accessed),
    )(obs_p, w1p, b1p, w2p, b2p, w3p, b3p, w4p, b4p, w5p, b5p)

    return q_pad[:B, :]


def init_params(key, input_dim, hidden_dim, n_actions):
    """Deterministic nn.Linear-style init. Weights stored [in_features, out_features]
    (transposed vs PyTorch), biases as [1, out_features]."""
    dims = [(input_dim, hidden_dim),
            (hidden_dim, hidden_dim),
            (hidden_dim, hidden_dim),
            (hidden_dim, hidden_dim // 2),
            (hidden_dim // 2, n_actions)]
    params = []
    for (fan_in, fan_out) in dims:
        key, kw, kb = jax.random.split(key, 3)
        bound = 1.0 / jnp.sqrt(jnp.float32(fan_in))
        w = jax.random.uniform(kw, (fan_in, fan_out), jnp.float32, -bound, bound)
        b = jax.random.uniform(kb, (1, fan_out), jnp.float32, -bound, bound)
        params.append((w, b))
    return params


def agent_net_ref(obs, params):
    """Pure-JAX f32 reference for correctness check."""
    (w1, b1), (w2, b2), (w3, b3), (w4, b4), (w5, b5) = params
    h = jnp.maximum(obs @ w1 + b1, 0.0)
    h = jnp.maximum(h @ w2 + b2, 0.0)
    h = jnp.maximum(h @ w3 + b3, 0.0)
    h = jnp.maximum(h @ w4 + b4, 0.0)
    return h @ w5 + b5


if __name__ == "__main__":
    input_dim, hidden_dim, n_actions = 16, 32, 8
    batch = 8

    key = jax.random.PRNGKey(0)
    key, kobs = jax.random.split(key)
    obs = jax.random.normal(kobs, (batch, input_dim), jnp.float32)
    params = init_params(key, input_dim, hidden_dim, n_actions)

    prepared = prepare_params(params)          # one-time weight pad + bf16 cast
    q = agent_net_forward(obs, prepared)
    jax.block_until_ready(q)

    q_ref = agent_net_ref(obs, params)
    assert q.shape == (batch, n_actions)
    # bf16 MXU operands (f32 accumulation) => expected quantization vs the pure-f32
    # reference; loosened tolerance is intentional, not a bug.
    assert jnp.allclose(q, q_ref, atol=5e-2, rtol=5e-2), "mismatch vs reference"

    print("KERNEL_OK")
</pallas_src>

<mosaic_0001>
module attributes {stable_mosaic.version = 11 : i64} {
  func.func @agent_net_kernel(%arg0: i32, %arg1: memref<8x16xbf16, #tpu.memory_space<vmem>>, %arg2: memref<16x128xbf16, #tpu.memory_space<vmem>>, %arg3: memref<1x128xf32, #tpu.memory_space<vmem>>, %arg4: memref<128x128xbf16, #tpu.memory_space<vmem>>, %arg5: memref<1x128xf32, #tpu.memory_space<vmem>>, %arg6: memref<128x128xbf16, #tpu.memory_space<vmem>>, %arg7: memref<1x128xf32, #tpu.memory_space<vmem>>, %arg8: memref<128x128xbf16, #tpu.memory_space<vmem>>, %arg9: memref<1x128xf32, #tpu.memory_space<vmem>>, %arg10: memref<128x8xbf16, #tpu.memory_space<vmem>>, %arg11: memref<1x8xf32, #tpu.memory_space<vmem>>, %arg12: memref<8x8xf32, #tpu.memory_space<vmem>>) attributes {dimension_semantics = [#tpu.dimension_semantics<parallel>], iteration_bounds = array<i64: 1>, scalar_prefetch = 0 : i64, scratch_operands = 0 : i64, tpu.core_type = #tpu.core_type<tc>, window_params = [{transform_indices = @transform_0, window_bounds = array<i64: 8, 16>}, {pipeline_mode = #tpu.pipeline_mode<synchronous>, transform_indices = @transform_1, window_bounds = array<i64: 16, 128>}, {pipeline_mode = #tpu.pipeline_mode<synchronous>, transform_indices = @transform_2, window_bounds = array<i64: 1, 128>}, {pipeline_mode = #tpu.pipeline_mode<synchronous>, transform_indices = @transform_3, window_bounds = array<i64: 128, 128>}, {pipeline_mode = #tpu.pipeline_mode<synchronous>, transform_indices = @transform_4, window_bounds = array<i64: 1, 128>}, {pipeline_mode = #tpu.pipeline_mode<synchronous>, transform_indices = @transform_5, window_bounds = array<i64: 128, 128>}, {pipeline_mode = #tpu.pipeline_mode<synchronous>, transform_indices = @transform_6, window_bounds = array<i64: 1, 128>}, {pipeline_mode = #tpu.pipeline_mode<synchronous>, transform_indices = @transform_7, window_bounds = array<i64: 128, 128>}, {pipeline_mode = #tpu.pipeline_mode<synchronous>, transform_indices = @transform_8, window_bounds = array<i64: 1, 128>}, {pipeline_mode = #tpu.pipeline_mode<synchronous>, transform_indices = @transform_9, window_bounds = array<i64: 128, 8>}, {pipeline_mode = #tpu.pipeline_mode<synchronous>, transform_indices = @transform_10, window_bounds = array<i64: 1, 8>}, {transform_indices = @transform_11, window_bounds = array<i64: 8, 8>}]} {
    %c0 = arith.constant 0 : index
    %c0_0 = arith.constant 0 : index
    %0 = vector.load %arg1[%c0, %c0_0] : memref<8x16xbf16, #tpu.memory_space<vmem>>, vector<8x16xbf16>
    %c0_1 = arith.constant 0 : index
    %c0_2 = arith.constant 0 : index
    %1 = vector.load %arg2[%c0_1, %c0_2] : memref<16x128xbf16, #tpu.memory_space<vmem>>, vector<16x128xbf16>
    %cst = arith.constant dense<0.000000e+00> : vector<8x128xf32>
    %2 = tpu.matmul %0, %1, %cst {dimension_numbers = #tpu.dot_dimension_numbers<[1], [0], [0], [1], [0, 0, 1, 1], [], []>} : vector<8x16xbf16>, vector<16x128xbf16>, vector<8x128xf32> -> vector<8x128xf32>
    %c0_3 = arith.constant 0 : index
    %c0_4 = arith.constant 0 : index
    %3 = vector.load %arg3[%c0_3, %c0_4] : memref<1x128xf32, #tpu.memory_space<vmem>>, vector<1x128xf32>
    %4 = vector.broadcast %3 : vector<1x128xf32> to vector<8x128xf32>
    %5 = arith.addf %2, %4 : vector<8x128xf32>
    %cst_5 = arith.constant 0.000000e+00 : f32
    %6 = vector.broadcast %cst_5 : f32 to vector<8x128xf32>
    %7 = arith.maximumf %5, %6 : vector<8x128xf32>
    %8 = arith.truncf %7 : vector<8x128xf32> to vector<8x128xbf16>
    %c0_6 = arith.constant 0 : index
    %c0_7 = arith.constant 0 : index
    %9 = vector.load %arg4[%c0_6, %c0_7] : memref<128x128xbf16, #tpu.memory_space<vmem>>, vector<128x128xbf16>
    %cst_8 = arith.constant dense<0.000000e+00> : vector<8x128xf32>
    %10 = tpu.matmul %8, %9, %cst_8 {dimension_numbers = #tpu.dot_dimension_numbers<[1], [0], [0], [1], [0, 0, 1, 1], [], []>} : vector<8x128xbf16>, vector<128x128xbf16>, vector<8x128xf32> -> vector<8x128xf32>
    %c0_9 = arith.constant 0 : index
    %c0_10 = arith.constant 0 : index
    %11 = vector.load %arg5[%c0_9, %c0_10] : memref<1x128xf32, #tpu.memory_space<vmem>>, vector<1x128xf32>
    %12 = vector.broadcast %11 : vector<1x128xf32> to vector<8x128xf32>
    %13 = arith.addf %10, %12 : vector<8x128xf32>
    %cst_11 = arith.constant 0.000000e+00 : f32
    %14 = vector.broadcast %cst_11 : f32 to vector<8x128xf32>
    %15 = arith.maximumf %13, %14 : vector<8x128xf32>
    %16 = arith.truncf %15 : vector<8x128xf32> to vector<8x128xbf16>
    %c0_12 = arith.constant 0 : index
    %c0_13 = arith.constant 0 : index
    %17 = vector.load %arg6[%c0_12, %c0_13] : memref<128x128xbf16, #tpu.memory_space<vmem>>, vector<128x128xbf16>
    %cst_14 = arith.constant dense<0.000000e+00> : vector<8x128xf32>
    %18 = tpu.matmul %16, %17, %cst_14 {dimension_numbers = #tpu.dot_dimension_numbers<[1], [0], [0], [1], [0, 0, 1, 1], [], []>} : vector<8x128xbf16>, vector<128x128xbf16>, vector<8x128xf32> -> vector<8x128xf32>
    %c0_15 = arith.constant 0 : index
    %c0_16 = arith.constant 0 : index
    %19 = vector.load %arg7[%c0_15, %c0_16] : memref<1x128xf32, #tpu.memory_space<vmem>>, vector<1x128xf32>
    %20 = vector.broadcast %19 : vector<1x128xf32> to vector<8x128xf32>
    %21 = arith.addf %18, %20 : vector<8x128xf32>
    %cst_17 = arith.constant 0.000000e+00 : f32
    %22 = vector.broadcast %cst_17 : f32 to vector<8x128xf32>
    %23 = arith.maximumf %21, %22 : vector<8x128xf32>
    %24 = arith.truncf %23 : vector<8x128xf32> to vector<8x128xbf16>
    %c0_18 = arith.constant 0 : index
    %c0_19 = arith.constant 0 : index
    %25 = vector.load %arg8[%c0_18, %c0_19] : memref<128x128xbf16, #tpu.memory_space<vmem>>, vector<128x128xbf16>
    %cst_20 = arith.constant dense<0.000000e+00> : vector<8x128xf32>
    %26 = tpu.matmul %24, %25, %cst_20 {dimension_numbers = #tpu.dot_dimension_numbers<[1], [0], [0], [1], [0, 0, 1, 1], [], []>} : vector<8x128xbf16>, vector<128x128xbf16>, vector<8x128xf32> -> vector<8x128xf32>
    %c0_21 = arith.constant 0 : index
    %c0_22 = arith.constant 0 : index
    %27 = vector.load %arg9[%c0_21, %c0_22] : memref<1x128xf32, #tpu.memory_space<vmem>>, vector<1x128xf32>
    %28 = vector.broadcast %27 : vector<1x128xf32> to vector<8x128xf32>
    %29 = arith.addf %26, %28 : vector<8x128xf32>
    %cst_23 = arith.constant 0.000000e+00 : f32
    %30 = vector.broadcast %cst_23 : f32 to vector<8x128xf32>
    %31 = arith.maximumf %29, %30 : vector<8x128xf32>
    %32 = arith.truncf %31 : vector<8x128xf32> to vector<8x128xbf16>
    %c0_24 = arith.constant 0 : index
    %c0_25 = arith.constant 0 : index
    %33 = vector.load %arg10[%c0_24, %c0_25] : memref<128x8xbf16, #tpu.memory_space<vmem>>, vector<128x8xbf16>
    %cst_26 = arith.constant dense<0.000000e+00> : vector<8x8xf32>
    %34 = tpu.matmul %32, %33, %cst_26 {dimension_numbers = #tpu.dot_dimension_numbers<[1], [0], [0], [1], [0, 0, 1, 1], [], []>} : vector<8x128xbf16>, vector<128x8xbf16>, vector<8x8xf32> -> vector<8x8xf32>
    %c0_27 = arith.constant 0 : index
    %c0_28 = arith.constant 0 : index
    %35 = vector.load %arg11[%c0_27, %c0_28] : memref<1x8xf32, #tpu.memory_space<vmem>>, vector<1x8xf32>
    %36 = vector.broadcast %35 : vector<1x8xf32> to vector<8x8xf32>
    %37 = arith.addf %34, %36 : vector<8x8xf32>
    %c0_29 = arith.constant 0 : index
    %c0_30 = arith.constant 0 : index
    %38 = vector.load %arg12[%c0_29, %c0_30] : memref<8x8xf32, #tpu.memory_space<vmem>>, vector<8x8xf32>
    tpu.vector_store %arg12[%c0_29, %c0_30], %37 {strides = array<i32>} : memref<8x8xf32, #tpu.memory_space<vmem>>, vector<8x8xf32>,
    return
  }
  func.func @transform_0(%arg0: i32) -> (i32, i32) {
    %c0_i32 = arith.constant 0 : i32
    %c0_i32_0 = arith.constant 0 : i32
    return %arg0, %c0_i32 : i32, i32
  }
  func.func @transform_1(%arg0: i32) -> (i32, i32) {
    %c0_i32 = arith.constant 0 : i32
    %c0_i32_0 = arith.constant 0 : i32
    %c0_i32_1 = arith.constant 0 : i32
    return %c0_i32, %c0_i32_0 : i32, i32
  }
  func.func @transform_2(%arg0: i32) -> (i32, i32) {
    %c0_i32 = arith.constant 0 : i32
    %c0_i32_0 = arith.constant 0 : i32
    %c0_i32_1 = arith.constant 0 : i32
    return %c0_i32, %c0_i32_0 : i32, i32
  }
  func.func @transform_3(%arg0: i32) -> (i32, i32) {
    %c0_i32 = arith.constant 0 : i32
    %c0_i32_0 = arith.constant 0 : i32
    %c0_i32_1 = arith.constant 0 : i32
    return %c0_i32, %c0_i32_0 : i32, i32
  }
  func.func @transform_4(%arg0: i32) -> (i32, i32) {
    %c0_i32 = arith.constant 0 : i32
    %c0_i32_0 = arith.constant 0 : i32
    %c0_i32_1 = arith.constant 0 : i32
    return %c0_i32, %c0_i32_0 : i32, i32
  }
  func.func @transform_5(%arg0: i32) -> (i32, i32) {
    %c0_i32 = arith.constant 0 : i32
    %c0_i32_0 = arith.constant 0 : i32
    %c0_i32_1 = arith.constant 0 : i32
    return %c0_i32, %c0_i32_0 : i32, i32
  }
  func.func @transform_6(%arg0: i32) -> (i32, i32) {
    %c0_i32 = arith.constant 0 : i32
    %c0_i32_0 = arith.constant 0 : i32
    %c0_i32_1 = arith.constant 0 : i32
    return %c0_i32, %c0_i32_0 : i32, i32
  }
  func.func @transform_7(%arg0: i32) -> (i32, i32) {
    %c0_i32 = arith.constant 0 : i32
    %c0_i32_0 = arith.constant 0 : i32
    %c0_i32_1 = arith.constant 0 : i32
    return %c0_i32, %c0_i32_0 : i32, i32
  }
  func.func @transform_8(%arg0: i32) -> (i32, i32) {
    %c0_i32 = arith.constant 0 : i32
    %c0_i32_0 = arith.constant 0 : i32
    %c0_i32_1 = arith.constant 0 : i32
    return %c0_i32, %c0_i32_0 : i32, i32
  }
  func.func @transform_9(%arg0: i32) -> (i32, i32) {
    %c0_i32 = arith.constant 0 : i32
    %c0_i32_0 = arith.constant 0 : i32
    %c0_i32_1 = arith.constant 0 : i32
    return %c0_i32, %c0_i32_0 : i32, i32
  }
  func.func @transform_10(%arg0: i32) -> (i32, i32) {
    %c0_i32 = arith.constant 0 : i32
    %c0_i32_0 = arith.constant 0 : i32
    %c0_i32_1 = arith.constant 0 : i32
    return %c0_i32, %c0_i32_0 : i32, i32
  }
  func.func @transform_11(%arg0: i32) -> (i32, i32) {
    %c0_i32 = arith.constant 0 : i32
    %c0_i32_0 = arith.constant 0 : i32
    return %arg0, %c0_i32 : i32, i32
  }
}

</mosaic_0001>

<llo_original>
// kernel: agent_net_forward.1
$region0: #{agent_net_forward.1}
  #allocation0 [shape = 'u32[]', space=smem, size = 0x4, offset = 0x4, fixed_abs, tag = 'smem constant byte address 0x4 - core index']
  #allocation1 [shape = 'u32[72,128]{1,0:T(1,128)}', space=vmem, size = 0x9000, scoped, tag = 'internal scratch']
  %s0 = inlined_call_operand.vmem [shape: bf16[8,16], index: 0, kind: input, shape index: {}]
  %s1 = inlined_call_operand.vmem [shape: bf16[16,128], index: 1, kind: input, shape index: {}]
  %s2 = inlined_call_operand.vmem [shape: f32[1,128], index: 2, kind: input, shape index: {}]
  %s3 = inlined_call_operand.vmem [shape: bf16[128,128], index: 3, kind: input, shape index: {}]
  %s4 = inlined_call_operand.vmem [shape: f32[1,128], index: 4, kind: input, shape index: {}]
  %s5 = inlined_call_operand.hbm [shape: bf16[128,128], index: 5, kind: input, shape index: {}]
  %s6 = inlined_call_operand.vmem [shape: f32[1,128], index: 6, kind: input, shape index: {}]
  %s7 = inlined_call_operand.hbm [shape: bf16[128,128], index: 7, kind: input, shape index: {}]
  %s8 = inlined_call_operand.vmem [shape: f32[1,128], index: 8, kind: input, shape index: {}]
  %s9 = inlined_call_operand.vmem [shape: bf16[128,8], index: 9, kind: input, shape index: {}]
  %s10 = inlined_call_operand.vmem [shape: f32[1,8], index: 10, kind: input, shape index: {}]
  %s11 = inlined_call_operand.hbm [shape: f32[8,8], index: 11, kind: output, shape index: {}]
  %s12 = sld [smem:[#allocation0]]
  $region62: #{agent_net_forward.1} parent=0
    _
  %s14 = ssub.s32 1, %s12
  %s15 = scalar_select 0, %s14, %s12
  $region1: #{agent_net_forward.1} parent=0
    #allocation2 [shape = 'u8[32768]{0}', space=vmem, size = 0x8000, scoped, tag = 'input window, operand 5, single buffered']
    #allocation3 [shape = 's32[1]{0}', space=sflag, size = 0x4, scoped, tag = 'scoped memory for agent_net_forward.1']
    #allocation4 [shape = 's32[1]{0}', space=sflag, size = 0x4, scoped, tag = 'scoped memory for agent_net_forward.1']
    #allocation5 [shape = 'u8[32768]{0}', space=vmem, size = 0x8000, scoped, tag = 'input window, operand 7, single buffered']
    #allocation6 [shape = 's32[1]{0}', space=sflag, size = 0x4, scoped, tag = 'scoped memory for agent_net_forward.1']
    #allocation7 [shape = 'u8[4096]{0}', space=vmem, size = 0x1000, scoped, tag = 'output window, operand 0, single buffered']
    %16 = vsyncpa [#allocation3], 0
    %17 = vsyncpa [#allocation6], 0
    %18 = vsyncpa [#allocation4], 0
    // Predicated region
    $region2: #{agent_net_forward.1} parent=1 // pred_check
      _
    $region3: #{agent_net_forward.1} parent=1 // pred_check_branch
      %20 = sbr.rel (0) target = $region5
    $region4: #{agent_net_forward.1} parent=1 // pred_region
      _
    $region5: #{agent_net_forward.1} parent=1 // pred_fallthru
      _
    // Predicated region
    $region6: #{agent_net_forward.1} parent=1 // pred_check
      _
    $region7: #{agent_net_forward.1} parent=1 // pred_check_branch
      %22 = sbr.rel (0) target = $region9
    $region8: #{agent_net_forward.1} parent=1 // pred_region
      _
    $region9: #{agent_net_forward.1} parent=1 // pred_fallthru
      _
    // Predicated region
    $region10: #{agent_net_forward.1} parent=1 // pred_check
      _
    $region11: #{agent_net_forward.1} parent=1 // pred_check_branch
      %24 = sbr.rel (0) target = $region13
    $region12: #{agent_net_forward.1} parent=1 // pred_region
      _
    $region13: #{agent_net_forward.1} parent=1 // pred_fallthru
      _
    // Predicated region
    $region14: #{agent_net_forward.1} parent=1 // pred_check
      _
    $region15: #{agent_net_forward.1} parent=1 // pred_check_branch
      %26 = sbr.rel (0) target = $region17
    $region16: #{agent_net_forward.1} parent=1 // pred_region
      _
    $region17: #{agent_net_forward.1} parent=1 // pred_fallthru
      _
    // Predicated region
    $region18: #{agent_net_forward.1} parent=1 // pred_check
      _
    $region19: #{agent_net_forward.1} parent=1 // pred_check_branch
      %28 = sbr.rel (0) target = $region21
    $region20: #{agent_net_forward.1} parent=1 // pred_region
      _
    $region21: #{agent_net_forward.1} parent=1 // pred_fallthru
      _
    // Predicated region
    $region22: #{agent_net_forward.1} parent=1 // pred_check
      _
    $region23: #{agent_net_forward.1} parent=1 // pred_check_branch
      %30 = sbr.rel (0) target = $region25
    $region24: #{agent_net_forward.1} parent=1 // pred_region
      %32 = vsyncadd [#allocation3], 0
      %s33 = sshll.u32 %s5, 4
      %s34 = int_to_ptr.hbm [resolvable:$true] %s33
      %s35 = sshll.u32 [#allocation2], 4
      %s36 = int_to_ptr.vmem [resolvable:$true] %s35
      %41 = dma.hbm_to_vmem [thread:$0]  %s34, 1024, %s36, [#allocation3], 64, 64, 4
    $region25: #{agent_net_forward.1} parent=1 // pred_fallthru
      _
    // Predicated region
    $region26: #{agent_net_forward.1} parent=1 // pred_check
      _
    $region27: #{agent_net_forward.1} parent=1 // pred_check_branch
      %43 = sbr.rel (0) target = $region29
    $region28: #{agent_net_forward.1} parent=1 // pred_region
      _
    $region29: #{agent_net_forward.1} parent=1 // pred_fallthru
      _
    // Predicated region
    $region30: #{agent_net_forward.1} parent=1 // pred_check
      _
    $region31: #{agent_net_forward.1} parent=1 // pred_check_branch
      %45 = sbr.rel (0) target = $region33
    $region32: #{agent_net_forward.1} parent=1 // pred_region
      %47 = vsyncadd [#allocation6], 0
      %s48 = sshll.u32 %s7, 4
      %s49 = int_to_ptr.hbm [resolvable:$true] %s48
      %s50 = sshll.u32 [#allocation5], 4
      %s51 = int_to_ptr.vmem [resolvable:$true] %s50
      %56 = dma.hbm_to_vmem [thread:$0]  %s49, 1024, %s51, [#allocation6], 64, 64, 4
    $region33: #{agent_net_forward.1} parent=1 // pred_fallthru
      _
    // Predicated region
    $region34: #{agent_net_forward.1} parent=1 // pred_check
      _
    $region35: #{agent_net_forward.1} parent=1 // pred_check_branch
      %58 = sbr.rel (0) target = $region37
    $region36: #{agent_net_forward.1} parent=1 // pred_region
      _
    $region37: #{agent_net_forward.1} parent=1 // pred_fallthru
      _
    // Predicated region
    $region38: #{agent_net_forward.1} parent=1 // pred_check
      _
    $region39: #{agent_net_forward.1} parent=1 // pred_check_branch
      %60 = sbr.rel (0) target = $region41
    $region40: #{agent_net_forward.1} parent=1 // pred_region
      _
    $region41: #{agent_net_forward.1} parent=1 // pred_fallthru
      _
    // Predicated region
    $region42: #{agent_net_forward.1} parent=1 // pred_check
      _
    $region43: #{agent_net_forward.1} parent=1 // pred_check_branch
      %62 = sbr.rel (0) target = $region45
    $region44: #{agent_net_forward.1} parent=1 // pred_region
      _
    $region45: #{agent_net_forward.1} parent=1 // pred_fallthru
      _
    // Predicated region
    $region46: #{agent_net_forward.1} parent=1 // pred_check
      _
    $region47: #{agent_net_forward.1} parent=1 // pred_check_branch
      %64 = sbr.rel (0) target = $region49
    $region48: #{agent_net_forward.1} parent=1 // pred_region
      %66 = dma.done [#allocation3], 1024
    $region49: #{agent_net_forward.1} parent=1 // pred_fallthru
      _
    // Predicated region
    $region50: #{agent_net_forward.1} parent=1 // pred_check
      _
    $region51: #{agent_net_forward.1} parent=1 // pred_check_branch
      %68 = sbr.rel (0) target = $region53
    $region52: #{agent_net_forward.1} parent=1 // pred_region
      %70 = dma.done [#allocation6], 1024
    $region53: #{agent_net_forward.1} parent=1 // pred_fallthru
      _
    %v72 = vld [vmem:[%s0] sm:$0xf]
    %v73 = vld [vmem:[%s1] sm:$0xf]
    %v74 = vld [vmem:[%s1 + $0x4] sm:$0xf]
    %v75 = vld [vmem:[%s2] sm:$0x1]
    %v77 = vperm.slane %v75, 0
    %v81 = vunpack.c.l.b16 %v73
    %v82 = vunpack.c.l.b16 %v74
    %v83 = vpack.c.b16 %v82, %v81
    %vm85 = vcmask 130048
    %v87 = vsel %vm85, %v72, 0
    %89 = vmatpush.bf16.msra.mxu0 0
    %90 = vmatpush.bf16.msra.mxu0 0
    %91 = vmatpush.bf16.msra.mxu0 0
    %92 = vmatpush.bf16.msra.mxu0 0
    %93 = vmatpush.bf16.msra.mxu0 0
    %94 = vmatpush.bf16.msra.mxu0 0
    %95 = vmatpush.bf16.msra.mxu0 0
    %96 = vmatpush.bf16.msra.mxu0 %v83
    %97 = vmatmul.bf16.gmra.mxu0 %v87
    %v98 = vpop.f32.mrf.mxu0
    %v99 = vadd.f32 %v77, %v98
    %v100 = vpop.f32.mrf.mxu0
    %101 = vdwg.mxu0
    %v102 = vmax.f32 %v99, 0.0
    %v103 = vpack.c.bf16 %v102, %v102
    %v104 = vld [vmem:[%s3] sm:$0xf]
    %v105 = vld [vmem:[%s3 + $0x4] sm:$0xf]
    %v106 = vld [vmem:[%s3 + $0x8] sm:$0xf]
    %v107 = vld [vmem:[%s3 + $0xc] sm:$0xf]
    %v108 = vld [vmem:[%s3 + $0x10] sm:$0xf]
    %v109 = vld [vmem:[%s3 + $0x14] sm:$0xf]
    %v110 = vld [vmem:[%s3 + $0x18] sm:$0xf]
    %v111 = vld [vmem:[%s3 + $0x1c] sm:$0xf]
    %v112 = vld [vmem:[%s3 + $0x20] sm:$0xf]
    %v113 = vld [vmem:[%s3 + $0x24] sm:$0xf]
    %v114 = vld [vmem:[%s3 + $0x28] sm:$0xf]
    %v115 = vld [vmem:[%s3 + $0x2c] sm:$0xf]
    %v116 = vld [vmem:[%s3 + $0x30] sm:$0xf]
    %v117 = vld [vmem:[%s3 + $0x34] sm:$0xf]
    %v118 = vld [vmem:[%s3 + $0x38] sm:$0xf]
    %v119 = vld [vmem:[%s3 + $0x3c] sm:$0xf]
    %v120 = vld [vmem:[%s4] sm:$0x1]
    %v122 = vperm.slane %v120, 0
    %v140 = vunpack.c.l.b16 %v104
    %v141 = vunpack.c.l.b16 %v105
    %v142 = vunpack.c.l.b16 %v106
    %v143 = vunpack.c.l.b16 %v107
    %v144 = vunpack.c.l.b16 %v108
    %v145 = vunpack.c.l.b16 %v109
    %v146 = vunpack.c.l.b16 %v110
    %v147 = vunpack.c.l.b16 %v111
    %v148 = vunpack.c.l.b16 %v112
    %v149 = vunpack.c.l.b16 %v113
    %v150 = vunpack.c.l.b16 %v114
    %v151 = vunpack.c.l.b16 %v115
    %v152 = vunpack.c.l.b16 %v116
    %v153 = vunpack.c.l.b16 %v117
    %v154 = vunpack.c.l.b16 %v118
    %v155 = vunpack.c.l.b16 %v119
    %v156 = vpack.c.b16 %v141, %v140
    %v157 = vpack.c.b16 %v143, %v142
    %v158 = vpack.c.b16 %v145, %v144
    %v159 = vpack.c.b16 %v147, %v146
    %v160 = vpack.c.b16 %v149, %v148
    %v161 = vpack.c.b16 %v151, %v150
    %v162 = vpack.c.b16 %v153, %v152
    %v163 = vpack.c.b16 %v155, %v154
    %172 = vmatpush.bf16.msra.mxu0 %v163
    %173 = vmatpush.bf16.msra.mxu0 %v162
    %174 = vmatpush.bf16.msra.mxu0 %v161
    %175 = vmatpush.bf16.msra.mxu0 %v160
    %176 = vmatpush.bf16.msra.mxu0 %v159
    %177 = vmatpush.bf16.msra.mxu0 %v158
    %178 = vmatpush.bf16.msra.mxu0 %v157
    %179 = vmatpush.bf16.msra.mxu0 %v156
    %180 = vmatmul.bf16.gmra.mxu0 %v103
    %v181 = vpop.f32.mrf.mxu0
    %v182 = vadd.f32 %v122, %v181
    %v183 = vpop.f32.mrf.mxu0
    %184 = vdwg.mxu0
    %v185 = vmax.f32 %v182, 0.0
    %v186 = vpack.c.bf16 %v185, %v185
    %v187 = vld [vmem:[#allocation2] sm:$0xf]
    %v188 = vld [vmem:[#allocation2 + $0x4] sm:$0xf]
    %v189 = vld [vmem:[#allocation2 + $0x8] sm:$0xf]
    %v190 = vld [vmem:[#allocation2 + $0xc] sm:$0xf]
    %v191 = vld [vmem:[#allocation2 + $0x10] sm:$0xf]
    %v192 = vld [vmem:[#allocation2 + $0x14] sm:$0xf]
    %v193 = vld [vmem:[#allocation2 + $0x18] sm:$0xf]
    %v194 = vld [vmem:[#allocation2 + $0x1c] sm:$0xf]
    %v195 = vld [vmem:[#allocation2 + $0x20] sm:$0xf]
    %v196 = vld [vmem:[#allocation2 + $0x24] sm:$0xf]
    %v197 = vld [vmem:[#allocation2 + $0x28] sm:$0xf]
    %v198 = vld [vmem:[#allocation2 + $0x2c] sm:$0xf]
    %v199 = vld [vmem:[#allocation2 + $0x30] sm:$0xf]
    %v200 = vld [vmem:[#allocation2 + $0x34] sm:$0xf]
    %v201 = vld [vmem:[#allocation2 + $0x38] sm:$0xf]
    %v202 = vld [vmem:[#allocation2 + $0x3c] sm:$0xf]
    %v203 = vld [vmem:[%s6] sm:$0x1]
    %v205 = vperm.slane %v203, 0
    %v223 = vunpack.c.l.b16 %v187
    %v224 = vunpack.c.l.b16 %v188
    %v225 = vunpack.c.l.b16 %v189
    %v226 = vunpack.c.l.b16 %v190
    %v227 = vunpack.c.l.b16 %v191
    %v228 = vunpack.c.l.b16 %v192
    %v229 = vunpack.c.l.b16 %v193
    %v230 = vunpack.c.l.b16 %v194
    %v231 = vunpack.c.l.b16 %v195
    %v232 = vunpack.c.l.b16 %v196
    %v233 = vunpack.c.l.b16 %v197
    %v234 = vunpack.c.l.b16 %v198
    %v235 = vunpack.c.l.b16 %v199
    %v236 = vunpack.c.l.b16 %v200
    %v237 = vunpack.c.l.b16 %v201
    %v238 = vunpack.c.l.b16 %v202
    %v239 = vpack.c.b16 %v224, %v223
    %v240 = vpack.c.b16 %v226, %v225
    %v241 = vpack.c.b16 %v228, %v227
    %v242 = vpack.c.b16 %v230, %v229
    %v243 = vpack.c.b16 %v232, %v231
    %v244 = vpack.c.b16 %v234, %v233
    %v245 = vpack.c.b16 %v236, %v235
    %v246 = vpack.c.b16 %v238, %v237
    %255 = vmatpush.bf16.msra.mxu0 %v246
    %256 = vmatpush.bf16.msra.mxu0 %v245
    %257 = vmatpush.bf16.msra.mxu0 %v244
    %258 = vmatpush.bf16.msra.mxu0 %v243
    %259 = vmatpush.bf16.msra.mxu0 %v242
    %260 = vmatpush.bf16.msra.mxu0 %v241
    %261 = vmatpush.bf16.msra.mxu0 %v240
    %262 = vmatpush.bf16.msra.mxu0 %v239
    %263 = vmatmul.bf16.gmra.mxu0 %v186
    %v264 = vpop.f32.mrf.mxu0
    %v265 = vadd.f32 %v205, %v264
    %v266 = vpop.f32.mrf.mxu0
    %267 = vdwg.mxu0
    %v268 = vmax.f32 %v265, 0.0
    %v269 = vpack.c.bf16 %v268, %v268
    %v270 = vld [vmem:[#allocation5] sm:$0xf]
    %v271 = vld [vmem:[#allocation5 + $0x4] sm:$0xf]
    %v272 = vld [vmem:[#allocation5 + $0x8] sm:$0xf]
    %v273 = vld [vmem:[#allocation5 + $0xc] sm:$0xf]
    %v274 = vld [vmem:[#allocation5 + $0x10] sm:$0xf]
    %v275 = vld [vmem:[#allocation5 + $0x14] sm:$0xf]
    %v276 = vld [vmem:[#allocation5 + $0x18] sm:$0xf]
    %v277 = vld [vmem:[#allocation5 + $0x1c] sm:$0xf]
    %v278 = vld [vmem:[#allocation5 + $0x20] sm:$0xf]
    %v279 = vld [vmem:[#allocation5 + $0x24] sm:$0xf]
    %v280 = vld [vmem:[#allocation5 + $0x28] sm:$0xf]
    %v281 = vld [vmem:[#allocation5 + $0x2c] sm:$0xf]
    %v282 = vld [vmem:[#allocation5 + $0x30] sm:$0xf]
    %v283 = vld [vmem:[#allocation5 + $0x34] sm:$0xf]
    %v284 = vld [vmem:[#allocation5 + $0x38] sm:$0xf]
    %v285 = vld [vmem:[#allocation5 + $0x3c] sm:$0xf]
    %v286 = vld [vmem:[%s8] sm:$0x1]
    %v288 = vperm.slane %v286, 0
    %v306 = vunpack.c.l.b16 %v270
    %v307 = vunpack.c.l.b16 %v271
    %v308 = vunpack.c.l.b16 %v272
    %v309 = vunpack.c.l.b16 %v273
    %v310 = vunpack.c.l.b16 %v274
    %v311 = vunpack.c.l.b16 %v275
    %v312 = vunpack.c.l.b16 %v276
    %v313 = vunpack.c.l.b16 %v277
    %v314 = vunpack.c.l.b16 %v278
    %v315 = vunpack.c.l.b16 %v279
    %v316 = vunpack.c.l.b16 %v280
    %v317 = vunpack.c.l.b16 %v281
    %v318 = vunpack.c.l.b16 %v282
    %v319 = vunpack.c.l.b16 %v283
    %v320 = vunpack.c.l.b16 %v284
    %v321 = vunpack.c.l.b16 %v285
    %v322 = vpack.c.b16 %v307, %v306
    %v323 = vpack.c.b16 %v309, %v308
    %v324 = vpack.c.b16 %v311, %v310
    %v325 = vpack.c.b16 %v313, %v312
    %v326 = vpack.c.b16 %v315, %v314
    %v327 = vpack.c.b16 %v317, %v316
    %v328 = vpack.c.b16 %v319, %v318
    %v329 = vpack.c.b16 %v321, %v320
    %338 = vmatpush.bf16.msra.mxu0 %v329
    %339 = vmatpush.bf16.msra.mxu0 %v328
    %340 = vmatpush.bf16.msra.mxu0 %v327
    %341 = vmatpush.bf16.msra.mxu0 %v326
    %342 = vmatpush.bf16.msra.mxu0 %v325
    %343 = vmatpush.bf16.msra.mxu0 %v324
    %344 = vmatpush.bf16.msra.mxu0 %v323
    %345 = vmatpush.bf16.msra.mxu0 %v322
    %346 = vmatmul.bf16.gmra.mxu0 %v269
    %v347 = vpop.f32.mrf.mxu0
    %v348 = vadd.f32 %v288, %v347
    %v349 = vpop.f32.mrf.mxu0
    %350 = vdwg.mxu0
    %v351 = vmax.f32 %v348, 0.0
    %v352 = vpack.c.bf16 %v351, %v351
    %v353 = vld [vmem:[%s9] sm:$0xf]
    %v354 = vld [vmem:[%s9 + $0x4] sm:$0xf]
    %v355 = vld [vmem:[%s9 + $0x8] sm:$0xf]
    %v356 = vld [vmem:[%s9 + $0xc] sm:$0xf]
    %v357 = vld [vmem:[%s9 + $0x10] sm:$0xf]
    %v358 = vld [vmem:[%s9 + $0x14] sm:$0xf]
    %v359 = vld [vmem:[%s9 + $0x18] sm:$0xf]
    %v360 = vld [vmem:[%s9 + $0x1c] sm:$0xf]
    %v361 = vld [vmem:[%s9 + $0x20] sm:$0xf]
    %v362 = vld [vmem:[%s9 + $0x24] sm:$0xf]
    %v363 = vld [vmem:[%s9 + $0x28] sm:$0xf]
    %v364 = vld [vmem:[%s9 + $0x2c] sm:$0xf]
    %v365 = vld [vmem:[%s9 + $0x30] sm:$0xf]
    %v366 = vld [vmem:[%s9 + $0x34] sm:$0xf]
    %v367 = vld [vmem:[%s9 + $0x38] sm:$0xf]
    %v368 = vld [vmem:[%s9 + $0x3c] sm:$0xf]
    %v369 = vld [vmem:[%s10] sm:$0x1]
    %v371 = vperm.slane %v369, 0
    %v389 = vunpack.c.l.b16 %v353
    %v390 = vunpack.c.l.b16 %v354
    %v391 = vunpack.c.l.b16 %v355
    %v392 = vunpack.c.l.b16 %v356
    %v393 = vunpack.c.l.b16 %v357
    %v394 = vunpack.c.l.b16 %v358
    %v395 = vunpack.c.l.b16 %v359
    %v396 = vunpack.c.l.b16 %v360
    %v397 = vunpack.c.l.b16 %v361
    %v398 = vunpack.c.l.b16 %v362
    %v399 = vunpack.c.l.b16 %v363
    %v400 = vunpack.c.l.b16 %v364
    %v401 = vunpack.c.l.b16 %v365
    %v402 = vunpack.c.l.b16 %v366
    %v403 = vunpack.c.l.b16 %v367
    %v404 = vunpack.c.l.b16 %v368
    %v405 = vpack.c.b16 %v390, %v389
    %v406 = vpack.c.b16 %v392, %v391
    %v407 = vpack.c.b16 %v394, %v393
    %v408 = vpack.c.b16 %v396, %v395
    %v409 = vpack.c.b16 %v398, %v397
    %v410 = vpack.c.b16 %v400, %v399
    %v411 = vpack.c.b16 %v402, %v401
    %v412 = vpack.c.b16 %v404, %v403
    %421 = vmatpush.bf16.msra.mxu0 %v412
    %422 = vmatpush.bf16.msra.mxu0 %v411
    %423 = vmatpush.bf16.msra.mxu0 %v410
    %424 = vmatpush.bf16.msra.mxu0 %v409
    %425 = vmatpush.bf16.msra.mxu0 %v408
    %426 = vmatpush.bf16.msra.mxu0 %v407
    %427 = vmatpush.bf16.msra.mxu0 %v406
    %428 = vmatpush.bf16.msra.mxu0 %v405
    %429 = vmatmul.bf16.gmra.mxu0 %v352
    %v430 = vpop.f32.mrf.mxu0
    %v431 = vadd.f32 %v371, %v430
    %v432 = vpop.f32.mrf.mxu0
    %433 = vdwg.mxu0
    %vm434 = vcmask 64512
    %435 = vst.msk [vmem:[#allocation7] sm:$0xff] %vm434, %v431
    // Predicated region
    $region54: #{agent_net_forward.1} parent=1 // pred_check
      _
    $region55: #{agent_net_forward.1} parent=1 // pred_check_branch
      %437 = sbr.rel (0) target = $region57
    $region56: #{agent_net_forward.1} parent=1 // pred_region
      %439 = vsyncadd [#allocation4], 0
      %s441 = sshll.u32 [#allocation7], 4
      %s442 = int_to_ptr.vmem [resolvable:$true] %s441
      %s443 = sshll.u32 %s11, 4
      %s444 = int_to_ptr.hbm [resolvable:$true] %s443
      %446 = dma.vmem_to_hbm [thread:$0]  %s442, 128, %s444, [#allocation4]
    $region57: #{agent_net_forward.1} parent=1 // pred_fallthru
      _
    // Predicated region
    $region58: #{agent_net_forward.1} parent=1 // pred_check
      _
    $region59: #{agent_net_forward.1} parent=1 // pred_check_branch
      %448 = sbr.rel (0) target = $region61
    $region60: #{agent_net_forward.1} parent=1 // pred_region
      %450 = dma.done [#allocation4], 128
    $region61: #{agent_net_forward.1} parent=1 // pred_fallthru
      _
    %451 = vsyncpa [#allocation3], 1
    %452 = vsyncpa [#allocation6], 1
    %453 = vsyncpa [#allocation4], 1

</llo_original>
